<compile_context>
chip_gen: v6e
topology: v6e:2x2x1
jax: 0.10.0
libtpu: 0.0.40
codegen_flags: <defaults>
</compile_context>

<pallas_src>
import functools

import jax
import jax.numpy as jnp
from jax.experimental import pallas as pl
from jax.experimental.pallas import tpu as pltpu

# ---- model sizes (small, tile-friendly) -------------------------------------
V = 128   # vocab size            (lane-aligned: multiple of 128)
T = 8     # context / block_size  (sublane-aligned: multiple of 8)
B = 2     # batch


# ---- kernel 1: forward pass (logits = W[idx] via one-hot matmul on the MXU) --
def _logits_kernel(idx_ref, w_ref, out_ref):
    # idx_ref: (tm, 1) int32 VMEM  (flattened token ids for this row tile)
    # w_ref:   (V, V)  f32   VMEM  (bigram table: row v -> logits over next tok)
    # out_ref: (tm, V) f32   VMEM  (lane-dense logits slab, one unmasked store)
    vocab = w_ref.shape[0]
    ids = jnp.clip(idx_ref[...], 0, vocab - 1)                       # (tm, 1)
    cols = jax.lax.broadcasted_iota(jnp.int32, (ids.shape[0], vocab), 1)
    onehot = (cols == ids).astype(w_ref.dtype)                       # (tm, V)
    out_ref[...] = jnp.dot(onehot, w_ref[...],
                           preferred_element_type=jnp.float32)


def bigram_logits(idx, w):
    b, t = idx.shape
    v = w.shape[0]
    bt = b * t
    flat_idx = idx.reshape(bt, 1).astype(jnp.int32)
    # Row tile: whole thing at toy sizes; 512-row pipelined tiles at scale.
    tm = 512 if (bt % 512 == 0) else bt
    flat = pl.pallas_call(
        _logits_kernel,
        out_shape=jax.ShapeDtypeStruct((bt, v), jnp.float32),
        grid=(bt // tm,),
        in_specs=[pl.BlockSpec((tm, 1), lambda i: (i, 0)),
                  pl.BlockSpec((v, v), lambda i: (0, 0))],
        out_specs=pl.BlockSpec((tm, v), lambda i: (i, 0)),
        compiler_params=pltpu.CompilerParams(
            dimension_semantics=("parallel",)),
    )(flat_idx, w)
    return flat.reshape(b, t, v)


# ---- kernel 2: fused autoregressive generate (Gumbel-max sampling) -----------
def _generate_kernel(idx_ref, w_ref, g_ref, out_ref, *, prompt_len, max_len):
    # idx_ref: (B, T0)           int32 VMEM  — prompt
    # w_ref:   (V, V)            f32   VMEM  — resident across all steps
    # g_ref:   (max_len, B, V)   f32   VMEM  — pre-generated Gumbel noise
    # out_ref: (B, T0 + max_len) int32 VMEM  — token buffer (prompt + samples)
    batch = idx_ref.shape[0]
    vocab = w_ref.shape[0]
    lane = jax.lax.broadcasted_iota(jnp.int32, (batch, vocab), 1)     # (B, V)
    wmat = w_ref[...]                                                 # hoisted

    # Recurrence state = one-hot of the last token, kept in vregs.
    last = jnp.clip(idx_ref[:, prompt_len - 1:prompt_len], 0, vocab - 1)
    onehot = (lane == last).astype(jnp.float32)                       # (B, V)

    for s in range(max_len):                 # static unroll: max_len is small
        # 1) Gather = onehot @ W on the MXU (bigram logits of the last token).
        logits = jnp.dot(onehot, wmat, preferred_element_type=jnp.float32)
        # 2) Gumbel-max sample  ==  multinomial(softmax(logits), num_samples=1).
        scores = logits + g_ref[s]                                    # (B, V)
        mx = jnp.max(scores, axis=-1, keepdims=True)
        nxt = jnp.min(jnp.where(scores >= mx, lane, vocab),
                      axis=-1, keepdims=True)                         # (B,1) i32
        # 3) Token store is off the critical path; the recurrence feeds only
        #    through `onehot`, which never leaves vregs.
        out_ref[:, prompt_len + s:prompt_len + s + 1] = nxt
        onehot = (lane == nxt).astype(jnp.float32)

    out_ref[:, :prompt_len] = idx_ref[...]


@functools.partial(jax.jit, static_argnames=("max_len", "block_size"))
def generate(idx, w, key, max_len, block_size=None):
    """Mirrors BaseLM.generate, fully fused into one pallas_call.

    For the bigram head the next-token distribution depends only on the last
    token, so the `idx[:, -block_size:]` crop of the reference loop cannot
    change the result; the kernel conditions on the last token directly.
    """
    del block_size
    b, t0 = idx.shape
    v = w.shape[0]
    assert t0 >= 1, "generate requires a non-empty prompt"
    # RNG hoisted out of the kernel (prologue work; also required because the
    # on-chip pltpu PRNG has no CPU/interpret lowering).
    gumbel = jax.random.gumbel(key, (max_len, b, v), dtype=jnp.float32)
    return pl.pallas_call(
        functools.partial(_generate_kernel, prompt_len=t0, max_len=max_len),
        out_shape=jax.ShapeDtypeStruct((b, t0 + max_len), jnp.int32),
        in_specs=[pl.BlockSpec(memory_space=pltpu.MemorySpace.VMEM)] * 3,
        out_specs=pl.BlockSpec(memory_space=pltpu.MemorySpace.VMEM),
    )(idx.astype(jnp.int32), w, gumbel)


# ---- plain-JAX glue: forward(idx, targets) ------------------------------------
def forward(idx, w, targets=None):
    """Returns (logits, loss) like the PyTorch forward contract."""
    logits = bigram_logits(idx, w)                    # (B, T, V)
    loss = None
    if targets is not None:
        # Cross-entropy glue (not the hot path exercised by generate()).
        lse = jax.nn.logsumexp(logits, axis=-1)                        # (B, T)
        tgt_logit = jnp.take_along_axis(
            logits, targets[..., None], axis=-1)[..., 0]               # (B, T)
        loss = jnp.mean(lse - tgt_logit)
    return logits, loss


if __name__ == "__main__":
    root = jax.random.PRNGKey(0)
    k_w, k_idx, k_tgt, k_gen = jax.random.split(root, 4)

    # Deterministic "parameters": bigram logit table (V, V).
    w = jax.random.normal(k_w, (V, V), dtype=jnp.float32) * 0.02

    # Example inputs.
    idx = jax.random.randint(k_idx, (B, T), 0, V, dtype=jnp.int32)
    targets = jax.random.randint(k_tgt, (B, T), 0, V, dtype=jnp.int32)

    # Forward pass (logits + loss).
    logits, loss = forward(idx, w, targets)
    jax.block_until_ready(logits)
    jax.block_until_ready(loss)
    assert logits.shape == (B, T, V) and logits.dtype == jnp.float32
    assert bool(jnp.allclose(logits, w[idx], rtol=1e-6, atol=1e-6)), \
        "one-hot gather logits mismatch"
    assert loss.shape == () and bool(jnp.isfinite(loss))

    # Fused autoregressive generate (whole loop in ONE pallas_call).
    max_len = 4
    out = generate(idx, w, k_gen, max_len=max_len, block_size=T)
    out = jax.block_until_ready(out)
    assert out.shape == (B, T + max_len) and out.dtype == jnp.int32
    assert jnp.array_equal(out[:, :T], idx), "prompt prefix not preserved"
    assert bool(jnp.all((out >= 0) & (out < V)))

    print("KERNEL_OK")
</pallas_src>

<mosaic_0001>
module attributes {stable_mosaic.version = 11 : i64} {
  func.func @_logits_kernel(%arg0: i32, %arg1: memref<16x1xi32, #tpu.memory_space<vmem>>, %arg2: memref<128x128xf32, #tpu.memory_space<vmem>>, %arg3: memref<16x128xf32, #tpu.memory_space<vmem>>) attributes {dimension_semantics = [#tpu.dimension_semantics<parallel>], iteration_bounds = array<i64: 1>, scalar_prefetch = 0 : i64, scratch_operands = 0 : i64, tpu.core_type = #tpu.core_type<tc>, window_params = [{transform_indices = @transform_0, window_bounds = array<i64: 16, 1>}, {pipeline_mode = #tpu.pipeline_mode<synchronous>, transform_indices = @transform_1, window_bounds = array<i64: 128, 128>}, {transform_indices = @transform_2, window_bounds = array<i64: 16, 128>}]} {
    %c0 = arith.constant 0 : index
    %c0_0 = arith.constant 0 : index
    %0 = vector.load %arg1[%c0, %c0_0] : memref<16x1xi32, #tpu.memory_space<vmem>>, vector<16x1xi32>
    %c0_i32 = arith.constant 0 : i32
    %c127_i32 = arith.constant 127 : i32
    %1 = vector.broadcast %c0_i32 : i32 to vector<16x1xi32>
    %2 = arith.maxsi %1, %0 : vector<16x1xi32>
    %3 = vector.broadcast %c127_i32 : i32 to vector<16x1xi32>
    %4 = arith.minsi %3, %2 : vector<16x1xi32>
    %5 = tpu.iota {dimensions = array<i32: 1>} : vector<16x128xi32>
    %6 = vector.broadcast %4 : vector<16x1xi32> to vector<16x128xi32>
    %7 = arith.cmpi eq, %5, %6 : vector<16x128xi32>
    %8 = arith.extui %7 : vector<16x128xi1> to vector<16x128xi32>
    %9 = arith.sitofp %8 : vector<16x128xi32> to vector<16x128xf32>
    %c0_1 = arith.constant 0 : index
    %c0_2 = arith.constant 0 : index
    %10 = vector.load %arg2[%c0_1, %c0_2] : memref<128x128xf32, #tpu.memory_space<vmem>>, vector<128x128xf32>
    %cst = arith.constant dense<0.000000e+00> : vector<16x128xf32>
    %11 = tpu.matmul %9, %10, %cst {dimension_numbers = #tpu.dot_dimension_numbers<[1], [0], [0], [1], [0, 0, 1, 1], [], []>} : vector<16x128xf32>, vector<128x128xf32>, vector<16x128xf32> -> vector<16x128xf32>
    %c0_3 = arith.constant 0 : index
    %c0_4 = arith.constant 0 : index
    %12 = vector.load %arg3[%c0_3, %c0_4] : memref<16x128xf32, #tpu.memory_space<vmem>>, vector<16x128xf32>
    tpu.vector_store %arg3[%c0_3, %c0_4], %11 {strides = array<i32>} : memref<16x128xf32, #tpu.memory_space<vmem>>, vector<16x128xf32>,
    return
  }
  func.func @transform_0(%arg0: i32) -> (i32, i32) {
    %c0_i32 = arith.constant 0 : i32
    %c0_i32_0 = arith.constant 0 : i32
    return %arg0, %c0_i32 : i32, i32
  }
  func.func @transform_1(%arg0: i32) -> (i32, i32) {
    %c0_i32 = arith.constant 0 : i32
    %c0_i32_0 = arith.constant 0 : i32
    %c0_i32_1 = arith.constant 0 : i32
    return %c0_i32, %c0_i32_0 : i32, i32
  }
  func.func @transform_2(%arg0: i32) -> (i32, i32) {
    %c0_i32 = arith.constant 0 : i32
    %c0_i32_0 = arith.constant 0 : i32
    return %arg0, %c0_i32 : i32, i32
  }
}

</mosaic_0001>

<llo_original>
// kernel: tpu_custom_call.1
$region0: #{tpu_custom_call.1}
  #allocation0 [shape = 'u32[]', space=smem, size = 0x4, offset = 0x4, fixed_abs, tag = 'smem constant byte address 0x4 - core index']
  #allocation1 [shape = 'u32[144,128]{1,0:T(1,128)}', space=vmem, size = 0x12000, scoped, tag = 'internal scratch']
  %s0 = inlined_call_operand.vmem [shape: s32[16,1], index: 0, kind: input, shape index: {}]
  %s1 = inlined_call_operand.hbm [shape: f32[128,128], index: 1, kind: input, shape index: {}]
  %s2 = inlined_call_operand.hbm [shape: f32[16,128], index: 2, kind: output, shape index: {}]
  %s3 = sld [smem:[#allocation0]]
  $region22: #{tpu_custom_call.1} parent=0
    _
  %s5 = ssub.s32 1, %s3
  %s6 = scalar_select 0, %s5, %s3
  $region1: #{tpu_custom_call.1} parent=0
    #allocation2 [shape = 'u8[65536]{0}', space=vmem, size = 0x10000, scoped, tag = 'input window, operand 1, single buffered']
    #allocation3 [shape = 's32[1]{0}', space=sflag, size = 0x4, scoped, tag = 'scoped memory for tpu_custom_call.1']
    #allocation4 [shape = 's32[1]{0}', space=sflag, size = 0x4, scoped, tag = 'scoped memory for tpu_custom_call.1']
    #allocation5 [shape = 'u8[8192]{0}', space=vmem, size = 0x2000, scoped, tag = 'output window, operand 0, single buffered']
    %7 = vsyncpa [#allocation3], 0
    %8 = vsyncpa [#allocation4], 0
    // Predicated region
    $region2: #{tpu_custom_call.1} parent=1 // pred_check
      _
    $region3: #{tpu_custom_call.1} parent=1 // pred_check_branch
      %10 = sbr.rel (0) target = $region5
    $region4: #{tpu_custom_call.1} parent=1 // pred_region
      _
    $region5: #{tpu_custom_call.1} parent=1 // pred_fallthru
      _
    // Predicated region
    $region6: #{tpu_custom_call.1} parent=1 // pred_check
      _
    $region7: #{tpu_custom_call.1} parent=1 // pred_check_branch
      %12 = sbr.rel (0) target = $region9
    $region8: #{tpu_custom_call.1} parent=1 // pred_region
      %s14 = ssub.s32 2048, 2048
      %15 = vsyncadd [#allocation3], %s14
      %s16 = sshll.u32 [#allocation2], 4
      %s17 = int_to_ptr.vmem [resolvable:$true] %s16
      %22 = dma.hbm_to_vmem [thread:$0]  %s1, 2048, %s17, [#allocation3], 128, 128, 8
    $region9: #{tpu_custom_call.1} parent=1 // pred_fallthru
      _
    // Predicated region
    $region10: #{tpu_custom_call.1} parent=1 // pred_check
      _
    $region11: #{tpu_custom_call.1} parent=1 // pred_check_branch
      %24 = sbr.rel (0) target = $region13
    $region12: #{tpu_custom_call.1} parent=1 // pred_region
      %25 = dma.done [#allocation3], 2048
    $region13: #{tpu_custom_call.1} parent=1 // pred_fallthru
      _
    %v26 = vld [vmem:[%s0] sm:$0xff]
    %v27 = vld [vmem:[%s0 + $0x8] sm:$0xff]
    %vm28 = vcmp.gt.s32.totalorder %v26, 0
    %v29 = vsel %vm28, %v26, 0
    %vm30 = vcmp.gt.s32.totalorder %v27, 0
    %v31 = vsel %vm30, %v27, 0
    %vm32 = vcmp.lt.s32.totalorder %v29, 127
    %v33 = vsel %vm32, %v29, 127
    %vm34 = vcmp.lt.s32.totalorder %v31, 127
    %v35 = vsel %vm34, %v31, 127
    %v36 = vlaneseq
    %v37 = vand.u32 %v36, 127
    %38 = vset.pattern.permute.xlu0 0
    %39 = vperm.xlu0 %38, %v33
    %v40 = vpop.permute.xlu0 %39
    %41 = vset.pattern.permute.xlu0 0
    %42 = vperm.xlu0 %41, %v35
    %v43 = vpop.permute.xlu0 %42
    %vm44 = vcmp.eq.s32.totalorder %v37, %v40
    %vm45 = vcmp.eq.s32.totalorder %v37, %v43
    %v46 = vsel %vm44, 1, 0
    %v47 = vsel %vm45, 1, 0
    %v48 = vcvt.s32.f32 %v46
    %v49 = vcvt.s32.f32 %v47
    %v50 = vld [vmem:[#allocation2] sm:$0xff]
    %v51 = vld [vmem:[#allocation2 + $0x8] sm:$0xff]
    %v52 = vld [vmem:[#allocation2 + $0x10] sm:$0xff]
    %v53 = vld [vmem:[#allocation2 + $0x18] sm:$0xff]
    %v54 = vld [vmem:[#allocation2 + $0x20] sm:$0xff]
    %v55 = vld [vmem:[#allocation2 + $0x28] sm:$0xff]
    %v56 = vld [vmem:[#allocation2 + $0x30] sm:$0xff]
    %v57 = vld [vmem:[#allocation2 + $0x38] sm:$0xff]
    %v58 = vld [vmem:[#allocation2 + $0x40] sm:$0xff]
    %v59 = vld [vmem:[#allocation2 + $0x48] sm:$0xff]
    %v60 = vld [vmem:[#allocation2 + $0x50] sm:$0xff]
    %v61 = vld [vmem:[#allocation2 + $0x58] sm:$0xff]
    %v62 = vld [vmem:[#allocation2 + $0x60] sm:$0xff]
    %v63 = vld [vmem:[#allocation2 + $0x68] sm:$0xff]
    %v64 = vld [vmem:[#allocation2 + $0x70] sm:$0xff]
    %v65 = vld [vmem:[#allocation2 + $0x78] sm:$0xff]
    %66 = vmatprep.subr.mxu0 0.0
    %67 = vmatpush1.msra.mxu0 %v65
    %68 = vmatprep.subr.mxu0 0.0
    %69 = vmatpush1.msra.mxu0 %v64
    %70 = vmatprep.subr.mxu0 0.0
    %71 = vmatpush1.msra.mxu0 %v63
    %72 = vmatprep.subr.mxu0 0.0
    %73 = vmatpush1.msra.mxu0 %v62
    %74 = vmatprep.subr.mxu0 0.0
    %75 = vmatpush1.msra.mxu0 %v61
    %76 = vmatprep.subr.mxu0 0.0
    %77 = vmatpush1.msra.mxu0 %v60
    %78 = vmatprep.subr.mxu0 0.0
    %79 = vmatpush1.msra.mxu0 %v59
    %80 = vmatprep.subr.mxu0 0.0
    %81 = vmatpush1.msra.mxu0 %v58
    %82 = vmatprep.subr.mxu0 0.0
    %83 = vmatpush1.msra.mxu0 %v57
    %84 = vmatprep.subr.mxu0 0.0
    %85 = vmatpush1.msra.mxu0 %v56
    %86 = vmatprep.subr.mxu0 0.0
    %87 = vmatpush1.msra.mxu0 %v55
    %88 = vmatprep.subr.mxu0 0.0
    %89 = vmatpush1.msra.mxu0 %v54
    %90 = vmatprep.subr.mxu0 0.0
    %91 = vmatpush1.msra.mxu0 %v53
    %92 = vmatprep.subr.mxu0 0.0
    %93 = vmatpush1.msra.mxu0 %v52
    %94 = vmatprep.subr.mxu0 0.0
    %95 = vmatpush1.msra.mxu0 %v51
    %96 = vmatprep.subr.mxu0 0.0
    %97 = vmatpush1.msra.mxu0 %v50
    %98 = vmatprep.subr.mxu0 0.0
    %99 = vmatpush2.msra.mxu0 0.0
    %100 = vmatprep.subr.mxu0 0.0
    %101 = vmatpush2.msra.mxu0 0.0
    %102 = vmatprep.subr.mxu0 0.0
    %103 = vmatpush2.msra.mxu0 0.0
    %104 = vmatprep.subr.mxu0 0.0
    %105 = vmatpush2.msra.mxu0 0.0
    %106 = vmatprep.subr.mxu0 0.0
    %107 = vmatpush2.msra.mxu0 0.0
    %108 = vmatprep.subr.mxu0 0.0
    %109 = vmatpush2.msra.mxu0 0.0
    %110 = vmatprep.subr.mxu0 0.0
    %111 = vmatpush2.msra.mxu0 0.0
    %112 = vmatprep.subr.mxu0 0.0
    %113 = vmatpush2.msra.mxu0 0.0
    %114 = vmatprep.subr.mxu0 0.0
    %115 = vmatpush2.msra.mxu0 0.0
    %116 = vmatprep.subr.mxu0 0.0
    %117 = vmatpush2.msra.mxu0 0.0
    %118 = vmatprep.subr.mxu0 0.0
    %119 = vmatpush2.msra.mxu0 0.0
    %120 = vmatprep.subr.mxu0 0.0
    %121 = vmatpush2.msra.mxu0 0.0
    %122 = vmatprep.subr.mxu0 0.0
    %123 = vmatpush2.msra.mxu0 0.0
    %124 = vmatprep.subr.mxu0 0.0
    %125 = vmatpush2.msra.mxu0 0.0
    %126 = vmatprep.subr.mxu0 0.0
    %127 = vmatpush2.msra.mxu0 0.0
    %128 = vmatprep.subr.mxu0 0.0
    %129 = vmatpush2.msra.mxu0 0.0
    %130 = vmatprep.mubr.f32.mxu0 0.0
    %131 = vmatmul.mubr.f32.gmra.mxu0 %v48
    %v132 = vpop.f32.mrf.mxu0
    %v133 = vadd.f32 0.0, %v132
    %v134 = vpop.f32.mrf.mxu0
    %135 = vmatprep.mubr.f32.mxu0 0.0
    %136 = vmatmul.mubr.f32.gmra.mxu0 %v49
    %v137 = vpop.f32.mrf.mxu0
    %v138 = vadd.f32 0.0, %v137
    %v139 = vpop.f32.mrf.mxu0
    %140 = vdwg.mxu0
    %141 = vst [vmem:[#allocation5] sm:$0xff] %v133
    %142 = vst [vmem:[#allocation5 + $0x8] sm:$0xff] %v138
    // Predicated region
    $region14: #{tpu_custom_call.1} parent=1 // pred_check
      _
    $region15: #{tpu_custom_call.1} parent=1 // pred_check_branch
      %144 = sbr.rel (0) target = $region17
    $region16: #{tpu_custom_call.1} parent=1 // pred_region
      %s146 = ssub.s32 256, 256
      %147 = vsyncadd [#allocation4], %s146
      %s148 = sshll.u32 [#allocation5], 4
      %s149 = int_to_ptr.vmem [resolvable:$true] %s148
      %154 = dma.vmem_to_hbm [thread:$0]  %s149, 256, %s2, [#allocation4], 128, 128, 8
    $region17: #{tpu_custom_call.1} parent=1 // pred_fallthru
      _
    // Predicated region
    $region18: #{tpu_custom_call.1} parent=1 // pred_check
      _
    $region19: #{tpu_custom_call.1} parent=1 // pred_check_branch
      %156 = sbr.rel (0) target = $region21
    $region20: #{tpu_custom_call.1} parent=1 // pred_region
      %157 = dma.done [#allocation4], 256
    $region21: #{tpu_custom_call.1} parent=1 // pred_fallthru
      _
    %158 = vsyncpa [#allocation3], 1
    %159 = vsyncpa [#allocation4], 1

</llo_original>
